<compile_context>
chip_gen: v5e
topology: v5e:2x2
jax: 0.10.0
libtpu: 0.0.40
codegen_flags: <defaults>
</compile_context>

<pallas_src>
import functools
import math

import jax
import jax.numpy as jnp
from jax.experimental import pallas as pl
from jax.experimental.pallas import tpu as pltpu

EPS = 1e-5              # torch.nn.GroupNorm default eps
NEG_SLOPE = 0.01        # torch.nn.LeakyReLU default negative_slope
LANE = 128              # TPU lane width
_NO_IM2COL_MIN_CIN = 128  # skip the K*C_in fold once C_in alone fills the MXU rows


# ----------------------------- fused kernel --------------------------------


def _encoder_kernel(*refs, cfgs):
    """One grid step = one sample: all conv blocks + the 1x1 proj, activations in VMEM.

    refs = [x_slab, (w2d_i, prm_i) per layer, proj_w, proj_b]      (inputs)
           + [out]                                                 (output block)
           + per layer: [col_i (optional), acc_i, act_{i+1}]       (VMEM scratch)
    """
    L = len(cfgs)
    n_in = 1 + 2 * L + 2
    in_refs, o_ref, scr = refs[:n_in], refs[n_in], refs[n_in + 1:]

    x_ref = in_refs[0]
    pw_ref, pb_ref = in_refs[n_in - 2], in_refs[n_in - 1]

    src_ref = None          # None => layer 0 reads the (1, C0, Tpad0) input block
    si = 0
    for li, cfg in enumerate(cfgs):
        w_ref, prm_ref = in_refs[1 + 2 * li], in_refs[2 + 2 * li]
        C_in, C_out = cfg["C_in"], cfg["C_out"]
        K, s = cfg["K"], cfg["stride"]
        T_out, W = cfg["T_out"], cfg["W"]

        col_ref = None
        if cfg["use_col"]:
            col_ref = scr[si]
            si += 1
        acc_ref = scr[si]          # (C_out, W) f32 conv result (kept in VMEM, not vregs)
        nxt_ref = scr[si + 1]      # (C_out, Tpad_out) bf16 next-layer padded slab
        si += 2

        def tap(k, _src=src_ref, _W=W):
            # contiguous (unit-stride) shifted view of the current padded act slab
            if _src is None:
                return x_ref[0, :, k:k + _W]
            return _src[:, k:k + _W]

        if col_ref is not None:
            # im2col fold: K shifted views -> one (K*C_in, W) bf16 slab, ONE MXU matmul
            # (bf16 x bf16 -> f32), result written straight to VMEM.
            for k in range(K):
                col_ref[k * C_in:(k + 1) * C_in, :] = tap(k)
            acc_ref[...] = jnp.dot(w_ref[...], col_ref[...],
                                   preferred_element_type=jnp.float32)
        else:
            # C_in alone already fills the MXU contraction: skip the col slab
            # (K x VMEM win) and accumulate K shifted bf16 matmuls into the f32 scratch.
            for k in range(K):
                part = jnp.dot(w_ref[:, k * C_in:(k + 1) * C_in], tap(k),
                               preferred_element_type=jnp.float32)
                acc_ref[...] = part if k == 0 else acc_ref[...] + part

        prm = prm_ref[...]                                   # (C_out, 3) f32
        bias, gamma, beta = prm[:, 0:1], prm[:, 1:2], prm[:, 2:3]

        if s == 1:
            vb = acc_ref[:, 0:T_out] + bias
        else:
            # Stride-s subsampling: tiny per-sample 0/1 selection generated in-kernel
            # (no HBM DMA, no persistent VMEM, O(T_in*T_out) not O((B*T)^2)); kept in
            # f32 so the selection is numerically exact.
            win_w = (T_out - 1) * s + 1
            r = jax.lax.broadcasted_iota(jnp.int32, (win_w, T_out), 0)
            c = jax.lax.broadcasted_iota(jnp.int32, (win_w, T_out), 1)
            sel = jnp.where(r == c * s, 1.0, 0.0)
            vb = jnp.dot(acc_ref[:, 0:win_w], sel,
                         preferred_element_type=jnp.float32) + bias

        # GroupNorm(num_groups=1) over this sample's (C_out, T_out) slab, two-pass
        # statistics in f32, then per-channel affine and LeakyReLU(0.01).
        inv_n = 1.0 / float(C_out * T_out)
        mean = jnp.sum(vb, keepdims=True) * inv_n            # (1, 1)
        ctr = vb - mean
        var = jnp.sum(ctr * ctr, keepdims=True) * inv_n      # (1, 1)
        y = ctr * jax.lax.rsqrt(var + EPS)
        y = y * gamma + beta
        y = jnp.where(y > 0, y, NEG_SLOPE * y).astype(nxt_ref.dtype)

        # Write into the next layer's lane-aligned padded slab.  Only the 2*pad
        # conv-halo columns need zeroing; alignment-gap columns are read only by
        # windows whose outputs are dropped, so they may stay uninitialized.
        pad_n = cfg["pad_next"]
        if pad_n > 0:
            zpad = jnp.zeros((C_out, pad_n), nxt_ref.dtype)
            nxt_ref[:, 0:pad_n] = zpad
            nxt_ref[:, pad_n + T_out:pad_n + T_out + pad_n] = zpad
        if cfg["last"] and cfg["Tpad_out"] > T_out:
            # final slab feeds the 1x1 proj over its full lane-aligned width: zero its tail
            nxt_ref[:, T_out:] = jnp.zeros((C_out, cfg["Tpad_out"] - T_out), nxt_ref.dtype)
        nxt_ref[:, pad_n:pad_n + T_out] = y
        src_ref = nxt_ref

    # 1x1 projection: one bf16 channel-mixing matmul over the lane-aligned final slab.
    z = jnp.dot(pw_ref[...], src_ref[...], preferred_element_type=jnp.float32) + pb_ref[...]
    o_ref[0] = z.astype(o_ref.dtype)


# ----------------------------- wrapper --------------------------------------


def _round_up(n, m):
    return ((n + m - 1) // m) * m


def _nbytes(shape, dtype):
    n = 1
    for d in shape:
        n *= int(d)
    return n * jnp.dtype(dtype).itemsize


def encoder_forward(x, layer_params, proj_params, strides):
    """Fused Pallas forward of the whole Encoder.  x: (B, C0, T0) float32 -> (B, z, T_L)."""
    B, C0, T0 = x.shape
    proj_w, proj_b = proj_params
    z_dim = proj_w.shape[0]
    L = len(layer_params)

    inputs, in_specs, scratch, cfgs = [], [], [], []
    vmem_bytes = 0

    # ---- layer-0 input slab: zero-padded, lane-aligned, bf16, built by XLA ----
    pad0 = (layer_params[0]["w"].shape[-1] - 1) // 2
    Tpad_in = _round_up(T0 + 2 * pad0, LANE)
    x_slab = jnp.zeros((B, C0, Tpad_in), jnp.bfloat16)
    x_slab = x_slab.at[:, :, pad0:pad0 + T0].set(x.astype(jnp.bfloat16))
    inputs.append(x_slab)
    in_specs.append(pl.BlockSpec((1, C0, Tpad_in), lambda b: (b, 0, 0)))
    vmem_bytes += 2 * _nbytes((1, C0, Tpad_in), jnp.bfloat16)     # double-buffered block

    C_in, T_in = C0, T0
    for li, (p, s) in enumerate(zip(layer_params, strides)):
        C_out, c_in, K = p["w"].shape
        assert c_in == C_in, (c_in, C_in)
        pad = (K - 1) // 2
        T_out = (T_in + 2 * pad - K) // s + 1
        W = Tpad_in - (K - 1)                       # stride-1 window starts in the padded slab
        if li + 1 < L:
            K_next = layer_params[li + 1]["w"].shape[-1]
            pad_next = (K_next - 1) // 2
        else:
            pad_next = 0
        Tpad_out = _round_up(T_out + 2 * pad_next, LANE)
        use_col = C_in < _NO_IM2COL_MIN_CIN
        cfgs.append(dict(C_in=C_in, C_out=C_out, K=K, stride=s, T_out=T_out, W=W,
                         pad_next=pad_next, Tpad_out=Tpad_out, use_col=use_col,
                         last=(li == L - 1)))

        # Weight reshaped for the im2col matmul (rows ordered (k, c_in)), bf16 MXU operand.
        w2d = jnp.transpose(p["w"], (0, 2, 1)).reshape(C_out, K * C_in).astype(jnp.bfloat16)
        # bias / gamma / beta packed into one small f32 block (one DMA, not three).
        prm = jnp.stack([p["b"], p["g"], p["beta"]], axis=1).astype(jnp.float32)
        inputs += [w2d, prm]
        in_specs += [pl.BlockSpec((C_out, K * C_in), lambda b: (0, 0)),
                     pl.BlockSpec((C_out, 3), lambda b: (0, 0))]
        vmem_bytes += 2 * (_nbytes(w2d.shape, jnp.bfloat16) + _nbytes(prm.shape, jnp.float32))

        if use_col:
            scratch.append(pltpu.VMEM((K * C_in, W), jnp.bfloat16))   # im2col slab
            vmem_bytes += _nbytes((K * C_in, W), jnp.bfloat16)
        scratch.append(pltpu.VMEM((C_out, W), jnp.float32))           # conv result
        scratch.append(pltpu.VMEM((C_out, Tpad_out), jnp.bfloat16))   # next layer's act slab
        vmem_bytes += _nbytes((C_out, W), jnp.float32) + _nbytes((C_out, Tpad_out), jnp.bfloat16)

        C_in, T_in, Tpad_in = C_out, T_out, Tpad_out

    T_last, To_pad = T_in, Tpad_in
    pw = proj_w.astype(jnp.bfloat16)
    pb = proj_b.astype(jnp.float32)
    inputs += [pw, pb]
    in_specs += [pl.BlockSpec(tuple(pw.shape), lambda b: (0, 0)),
                 pl.BlockSpec(tuple(pb.shape), lambda b: (0, 0))]
    vmem_bytes += 2 * (_nbytes(pw.shape, jnp.bfloat16) + _nbytes(pb.shape, jnp.float32))
    vmem_bytes += 2 * _nbytes((1, z_dim, To_pad), x.dtype)            # output block

    # VMEM budget derived from the actual footprint, clamped to a v7x-safe range.
    vmem_limit = int(min(64 * 2 ** 20, max(8 * 2 ** 20, 4 * vmem_bytes)))

    kernel = functools.partial(_encoder_kernel, cfgs=tuple(cfgs))
    out = pl.pallas_call(
        kernel,
        out_shape=jax.ShapeDtypeStruct((B, z_dim, To_pad), x.dtype),  # lane-dense output slab
        grid=(B,),
        in_specs=in_specs,
        out_specs=pl.BlockSpec((1, z_dim, To_pad), lambda b: (b, 0, 0)),
        scratch_shapes=scratch,
        compiler_params=pltpu.CompilerParams(
            dimension_semantics=("parallel",),   # samples independent -> both v7x TCs
            vmem_limit_bytes=vmem_limit,
        ),
    )(*inputs)

    # Wrapper-side layout plumbing only: drop the lane-alignment padding.
    return out[:, :, :T_last]


# ----------------------------- params & reference ---------------------------


def init_encoder_params(key, arch, z_dim):
    """Deterministic synthetic params (PyTorch Conv1d default uniform fan-in init)."""
    layer_params = []
    for ci, co, k in zip(arch["input"], arch["output"], arch["kernel"]):
        key, k1, k2 = jax.random.split(key, 3)
        scale = 1.0 / math.sqrt(ci * k)
        layer_params.append(dict(
            w=jax.random.uniform(k1, (co, ci, k), jnp.float32, -scale, scale),
            b=jax.random.uniform(k2, (co,), jnp.float32, -scale, scale),
            g=jnp.ones((co,), jnp.float32),
            beta=jnp.zeros((co,), jnp.float32),
        ))
    key, k1, k2 = jax.random.split(key, 3)
    ci = arch["output"][-1]
    scale = 1.0 / math.sqrt(ci)
    proj_w = jax.random.uniform(k1, (z_dim, ci), jnp.float32, -scale, scale)
    proj_b = jax.random.uniform(k2, (z_dim, 1), jnp.float32, -scale, scale)
    return layer_params, (proj_w, proj_b)


def _reference_forward(x, layer_params, proj_params, strides, matmul_dtype=jnp.float32):
    """Pure-JAX reference.  With matmul_dtype=bf16 it mirrors the kernel's quantization
    points (bf16 matmul operands, f32 accumulation, f32 GN/LeakyReLU epilogue)."""
    y = x
    for p, s in zip(layer_params, strides):
        w = p["w"]
        K = w.shape[-1]
        pad = (K - 1) // 2
        y = jax.lax.conv_general_dilated(
            y.astype(matmul_dtype), w.astype(matmul_dtype),
            window_strides=(s,), padding=[(pad, pad)],
            dimension_numbers=("NCH", "OIH", "NCH"),
            preferred_element_type=jnp.float32)
        y = y + p["b"][None, :, None]
        mean = jnp.mean(y, axis=(1, 2), keepdims=True)
        var = jnp.mean((y - mean) ** 2, axis=(1, 2), keepdims=True)
        y = (y - mean) * jax.lax.rsqrt(var + EPS)
        y = y * p["g"][None, :, None] + p["beta"][None, :, None]
        y = jnp.where(y > 0, y, NEG_SLOPE * y)
    pw, pb = proj_params
    z = jnp.einsum("zc,bct->bzt", pw.astype(matmul_dtype), y.astype(matmul_dtype),
                   preferred_element_type=jnp.float32)
    return z + pb[None, :, :]


# ----------------------------- main ------------------------------------------


if __name__ == "__main__":
    arch = {
        "input": [4, 16],
        "output": [16, 32],
        "kernel": [5, 5],
        "stride": [1, 2],
    }
    z_dim = 8

    key = jax.random.PRNGKey(0)
    key, kx = jax.random.split(key)
    x = jax.random.normal(kx, (2, 4, 16), jnp.float32)   # (B, C, T)

    layer_params, proj_params = init_encoder_params(key, arch, z_dim)
    z = encoder_forward(x, layer_params, proj_params, arch["stride"])
    jax.block_until_ready(z)

    # layer0: T 16 -> 16 (stride 1); layer1: T 16 -> 8 (stride 2); proj: 32 -> z_dim channels
    assert z.shape == (2, z_dim, 8), z.shape

    # Tight check vs a reference with the same bf16 matmul-operand quantization
    # (differences are accumulation-order only).
    ref_bf16 = _reference_forward(x, layer_params, proj_params, arch["stride"],
                                  matmul_dtype=jnp.bfloat16)
    err_bf16 = float(jnp.max(jnp.abs(z - ref_bf16)))
    assert err_bf16 < 2.5e-2, f"mismatch vs bf16-matched reference: {err_bf16}"

    # Coarse check vs the full-f32 module semantics (bounds the bf16-operand error).
    ref_f32 = _reference_forward(x, layer_params, proj_params, arch["stride"],
                                 matmul_dtype=jnp.float32)
    err_f32 = float(jnp.max(jnp.abs(z - ref_f32)))
    assert err_f32 < 1e-1, f"mismatch vs f32 reference: {err_f32}"

    print("KERNEL_OK")
</pallas_src>

<mosaic_0001>
module attributes {stable_mosaic.version = 11 : i64} {
  func.func @_encoder_kernel(%arg0: i32, %arg1: memref<1x4x128xbf16, #tpu.memory_space<vmem>>, %arg2: memref<16x20xbf16, #tpu.memory_space<vmem>>, %arg3: memref<16x3xf32, #tpu.memory_space<vmem>>, %arg4: memref<32x80xbf16, #tpu.memory_space<vmem>>, %arg5: memref<32x3xf32, #tpu.memory_space<vmem>>, %arg6: memref<8x32xbf16, #tpu.memory_space<vmem>>, %arg7: memref<8x1xf32, #tpu.memory_space<vmem>>, %arg8: memref<1x8x128xf32, #tpu.memory_space<vmem>>, %arg9: memref<20x124xbf16, #tpu.memory_space<vmem>>, %arg10: memref<16x124xf32, #tpu.memory_space<vmem>>, %arg11: memref<16x128xbf16, #tpu.memory_space<vmem>>, %arg12: memref<80x124xbf16, #tpu.memory_space<vmem>>, %arg13: memref<32x124xf32, #tpu.memory_space<vmem>>, %arg14: memref<32x128xbf16, #tpu.memory_space<vmem>>) attributes {dimension_semantics = [#tpu.dimension_semantics<parallel>], iteration_bounds = array<i64: 2>, scalar_prefetch = 0 : i64, scratch_operands = 6 : i64, tpu.core_type = #tpu.core_type<tc>, window_params = [{transform_indices = @transform_0, window_bounds = array<i64: 1, 4, 128>}, {pipeline_mode = #tpu.pipeline_mode<synchronous>, transform_indices = @transform_1, window_bounds = array<i64: 16, 20>}, {pipeline_mode = #tpu.pipeline_mode<synchronous>, transform_indices = @transform_2, window_bounds = array<i64: 16, 3>}, {pipeline_mode = #tpu.pipeline_mode<synchronous>, transform_indices = @transform_3, window_bounds = array<i64: 32, 80>}, {pipeline_mode = #tpu.pipeline_mode<synchronous>, transform_indices = @transform_4, window_bounds = array<i64: 32, 3>}, {pipeline_mode = #tpu.pipeline_mode<synchronous>, transform_indices = @transform_5, window_bounds = array<i64: 8, 32>}, {pipeline_mode = #tpu.pipeline_mode<synchronous>, transform_indices = @transform_6, window_bounds = array<i64: 8, 1>}, {transform_indices = @transform_7, window_bounds = array<i64: 1, 8, 128>}]} {
    %c0 = arith.constant 0 : index
    %c0_0 = arith.constant 0 : index
    %c0_1 = arith.constant 0 : index
    %0 = vector.load %arg1[%c0, %c0_0, %c0_1] : memref<1x4x128xbf16, #tpu.memory_space<vmem>>, vector<1x4x124xbf16>
    %1 = vector.shape_cast %0 : vector<1x4x124xbf16> to vector<4x124xbf16>
    %c0_2 = arith.constant 0 : index
    %c0_3 = arith.constant 0 : index
    %2 = vector.load %arg9[%c0_2, %c0_3] : memref<20x124xbf16, #tpu.memory_space<vmem>>, vector<4x124xbf16>
    tpu.vector_store %arg9[%c0_2, %c0_3], %1 {strides = array<i32>} : memref<20x124xbf16, #tpu.memory_space<vmem>>, vector<4x124xbf16>,
    %c0_4 = arith.constant 0 : index
    %c0_5 = arith.constant 0 : index
    %c1 = arith.constant 1 : index
    %3 = vector.load %arg1[%c0_4, %c0_5, %c1] : memref<1x4x128xbf16, #tpu.memory_space<vmem>>, vector<1x4x124xbf16>
    %4 = vector.shape_cast %3 : vector<1x4x124xbf16> to vector<4x124xbf16>
    %c4 = arith.constant 4 : index
    %c0_6 = arith.constant 0 : index
    %5 = vector.load %arg9[%c4, %c0_6] : memref<20x124xbf16, #tpu.memory_space<vmem>>, vector<4x124xbf16>
    tpu.vector_store %arg9[%c4, %c0_6], %4 {strides = array<i32>} : memref<20x124xbf16, #tpu.memory_space<vmem>>, vector<4x124xbf16>,
    %c0_7 = arith.constant 0 : index
    %c0_8 = arith.constant 0 : index
    %c2 = arith.constant 2 : index
    %6 = vector.load %arg1[%c0_7, %c0_8, %c2] : memref<1x4x128xbf16, #tpu.memory_space<vmem>>, vector<1x4x124xbf16>
    %7 = vector.shape_cast %6 : vector<1x4x124xbf16> to vector<4x124xbf16>
    %c8 = arith.constant 8 : index
    %c0_9 = arith.constant 0 : index
    %8 = vector.load %arg9[%c8, %c0_9] : memref<20x124xbf16, #tpu.memory_space<vmem>>, vector<4x124xbf16>
    tpu.vector_store %arg9[%c8, %c0_9], %7 {strides = array<i32>} : memref<20x124xbf16, #tpu.memory_space<vmem>>, vector<4x124xbf16>,
    %c0_10 = arith.constant 0 : index
    %c0_11 = arith.constant 0 : index
    %c3 = arith.constant 3 : index
    %9 = vector.load %arg1[%c0_10, %c0_11, %c3] : memref<1x4x128xbf16, #tpu.memory_space<vmem>>, vector<1x4x124xbf16>
    %10 = vector.shape_cast %9 : vector<1x4x124xbf16> to vector<4x124xbf16>
    %c12 = arith.constant 12 : index
    %c0_12 = arith.constant 0 : index
    %11 = vector.load %arg9[%c12, %c0_12] : memref<20x124xbf16, #tpu.memory_space<vmem>>, vector<4x124xbf16>
    tpu.vector_store %arg9[%c12, %c0_12], %10 {strides = array<i32>} : memref<20x124xbf16, #tpu.memory_space<vmem>>, vector<4x124xbf16>,
    %c0_13 = arith.constant 0 : index
    %c0_14 = arith.constant 0 : index
    %c4_15 = arith.constant 4 : index
    %12 = vector.load %arg1[%c0_13, %c0_14, %c4_15] : memref<1x4x128xbf16, #tpu.memory_space<vmem>>, vector<1x4x124xbf16>
    %13 = vector.shape_cast %12 : vector<1x4x124xbf16> to vector<4x124xbf16>
    %c16 = arith.constant 16 : index
    %c0_16 = arith.constant 0 : index
    %14 = vector.load %arg9[%c16, %c0_16] : memref<20x124xbf16, #tpu.memory_space<vmem>>, vector<4x124xbf16>
    tpu.vector_store %arg9[%c16, %c0_16], %13 {strides = array<i32>} : memref<20x124xbf16, #tpu.memory_space<vmem>>, vector<4x124xbf16>,
    %c0_17 = arith.constant 0 : index
    %c0_18 = arith.constant 0 : index
    %15 = vector.load %arg2[%c0_17, %c0_18] : memref<16x20xbf16, #tpu.memory_space<vmem>>, vector<16x20xbf16>
    %c0_19 = arith.constant 0 : index
    %c0_20 = arith.constant 0 : index
    %16 = vector.load %arg9[%c0_19, %c0_20] : memref<20x124xbf16, #tpu.memory_space<vmem>>, vector<20x124xbf16>
    %cst = arith.constant dense<0.000000e+00> : vector<16x124xf32>
    %17 = tpu.matmul %15, %16, %cst {dimension_numbers = #tpu.dot_dimension_numbers<[1], [0], [0], [1], [0, 0, 1, 1], [], []>} : vector<16x20xbf16>, vector<20x124xbf16>, vector<16x124xf32> -> vector<16x124xf32>
    %c0_21 = arith.constant 0 : index
    %c0_22 = arith.constant 0 : index
    %18 = vector.load %arg10[%c0_21, %c0_22] : memref<16x124xf32, #tpu.memory_space<vmem>>, vector<16x124xf32>
    tpu.vector_store %arg10[%c0_21, %c0_22], %17 {strides = array<i32>} : memref<16x124xf32, #tpu.memory_space<vmem>>, vector<16x124xf32>,
    %c0_23 = arith.constant 0 : index
    %c0_24 = arith.constant 0 : index
    %19 = vector.load %arg3[%c0_23, %c0_24] : memref<16x3xf32, #tpu.memory_space<vmem>>, vector<16x3xf32>
    %20 = vector.extract_strided_slice %19 {offsets = [0, 0], sizes = [16, 1], strides = [1, 1]} : vector<16x3xf32> to vector<16x1xf32>
    %21 = vector.extract_strided_slice %19 {offsets = [0, 1], sizes = [16, 1], strides = [1, 1]} : vector<16x3xf32> to vector<16x1xf32>
    %22 = vector.extract_strided_slice %19 {offsets = [0, 2], sizes = [16, 1], strides = [1, 1]} : vector<16x3xf32> to vector<16x1xf32>
    %c0_25 = arith.constant 0 : index
    %c0_26 = arith.constant 0 : index
    %23 = vector.load %arg10[%c0_25, %c0_26] : memref<16x124xf32, #tpu.memory_space<vmem>>, vector<16x16xf32>
    %24 = vector.broadcast %20 : vector<16x1xf32> to vector<16x16xf32>
    %25 = arith.addf %23, %24 : vector<16x16xf32>
    %26 = vector.shape_cast %25 : vector<16x16xf32> to vector<1x16x16xf32>
    %cst_27 = arith.constant dense<0.000000e+00> : vector<1xf32>
    %27 = vector.multi_reduction <add>, %26, %cst_27 [1, 2] : vector<1x16x16xf32> to vector<1xf32>
    %28 = vector.shape_cast %27 : vector<1xf32> to vector<1x1x1xf32>
    %29 = vector.extract %28[0, 0, 0] : f32 from vector<1x1x1xf32>
    %30 = vector.broadcast %29 : f32 to vector<1x1xf32>
    %cst_28 = arith.constant 3.906250e-03 : f32
    %31 = vector.broadcast %cst_28 : f32 to vector<1x1xf32>
    %32 = arith.mulf %30, %31 : vector<1x1xf32>
    %33 = vector.broadcast %32 : vector<1x1xf32> to vector<16x16xf32>
    %34 = arith.subf %25, %33 : vector<16x16xf32>
    %35 = arith.mulf %34, %34 : vector<16x16xf32>
    %36 = vector.shape_cast %35 : vector<16x16xf32> to vector<1x16x16xf32>
    %cst_29 = arith.constant dense<0.000000e+00> : vector<1xf32>
    %37 = vector.multi_reduction <add>, %36, %cst_29 [1, 2] : vector<1x16x16xf32> to vector<1xf32>
    %38 = vector.shape_cast %37 : vector<1xf32> to vector<1x1x1xf32>
    %39 = vector.extract %38[0, 0, 0] : f32 from vector<1x1x1xf32>
    %40 = vector.broadcast %39 : f32 to vector<1x1xf32>
    %cst_30 = arith.constant 3.906250e-03 : f32
    %41 = vector.broadcast %cst_30 : f32 to vector<1x1xf32>
    %42 = arith.mulf %40, %41 : vector<1x1xf32>
    %cst_31 = arith.constant 9.99999974E-6 : f32
    %43 = vector.broadcast %cst_31 : f32 to vector<1x1xf32>
    %44 = arith.addf %42, %43 : vector<1x1xf32>
    %45 = math.rsqrt %44 : vector<1x1xf32>
    %46 = vector.broadcast %45 : vector<1x1xf32> to vector<16x16xf32>
    %47 = arith.mulf %34, %46 : vector<16x16xf32>
    %48 = vector.broadcast %21 : vector<16x1xf32> to vector<16x16xf32>
    %49 = arith.mulf %47, %48 : vector<16x16xf32>
    %50 = vector.broadcast %22 : vector<16x1xf32> to vector<16x16xf32>
    %51 = arith.addf %49, %50 : vector<16x16xf32>
    %cst_32 = arith.constant 0.000000e+00 : f32
    %52 = vector.broadcast %cst_32 : f32 to vector<16x16xf32>
    %53 = arith.cmpf ogt, %51, %52 : vector<16x16xf32>
    %cst_33 = arith.constant 0.00999999977 : f32
    %54 = vector.broadcast %cst_33 : f32 to vector<16x16xf32>
    %55 = arith.mulf %54, %51 : vector<16x16xf32>
    %56 = arith.select %53, %51, %55 : vector<16x16xi1>, vector<16x16xf32>
    %57 = arith.truncf %56 : vector<16x16xf32> to vector<16x16xbf16>
    %cst_34 = arith.constant 0.000000e+00 : bf16
    %58 = vector.broadcast %cst_34 : bf16 to vector<16x2xbf16>
    %c0_35 = arith.constant 0 : index
    %c0_36 = arith.constant 0 : index
    %59 = vector.load %arg11[%c0_35, %c0_36] : memref<16x128xbf16, #tpu.memory_space<vmem>>, vector<16x2xbf16>
    tpu.vector_store %arg11[%c0_35, %c0_36], %58 {strides = array<i32>} : memref<16x128xbf16, #tpu.memory_space<vmem>>, vector<16x2xbf16>,
    %c0_37 = arith.constant 0 : index
    %c18 = arith.constant 18 : index
    %60 = vector.load %arg11[%c0_37, %c18] : memref<16x128xbf16, #tpu.memory_space<vmem>>, vector<16x2xbf16>
    tpu.vector_store %arg11[%c0_37, %c18], %58 {strides = array<i32>} : memref<16x128xbf16, #tpu.memory_space<vmem>>, vector<16x2xbf16>,
    %c0_38 = arith.constant 0 : index
    %c2_39 = arith.constant 2 : index
    %61 = vector.load %arg11[%c0_38, %c2_39] : memref<16x128xbf16, #tpu.memory_space<vmem>>, vector<16x16xbf16>
    tpu.vector_store %arg11[%c0_38, %c2_39], %57 {strides = array<i32>} : memref<16x128xbf16, #tpu.memory_space<vmem>>, vector<16x16xbf16>,
    %c0_40 = arith.constant 0 : index
    %c0_41 = arith.constant 0 : index
    %62 = vector.load %arg11[%c0_40, %c0_41] : memref<16x128xbf16, #tpu.memory_space<vmem>>, vector<16x124xbf16>
    %c0_42 = arith.constant 0 : index
    %c0_43 = arith.constant 0 : index
    %63 = vector.load %arg12[%c0_42, %c0_43] : memref<80x124xbf16, #tpu.memory_space<vmem>>, vector<16x124xbf16>
    tpu.vector_store %arg12[%c0_42, %c0_43], %62 {strides = array<i32>} : memref<80x124xbf16, #tpu.memory_space<vmem>>, vector<16x124xbf16>,
    %c0_44 = arith.constant 0 : index
    %c1_45 = arith.constant 1 : index
    %64 = vector.load %arg11[%c0_44, %c1_45] : memref<16x128xbf16, #tpu.memory_space<vmem>>, vector<16x124xbf16>
    %c16_46 = arith.constant 16 : index
    %c0_47 = arith.constant 0 : index
    %65 = vector.load %arg12[%c16_46, %c0_47] : memref<80x124xbf16, #tpu.memory_space<vmem>>, vector<16x124xbf16>
    tpu.vector_store %arg12[%c16_46, %c0_47], %64 {strides = array<i32>} : memref<80x124xbf16, #tpu.memory_space<vmem>>, vector<16x124xbf16>,
    %c0_48 = arith.constant 0 : index
    %c2_49 = arith.constant 2 : index
    %66 = vector.load %arg11[%c0_48, %c2_49] : memref<16x128xbf16, #tpu.memory_space<vmem>>, vector<16x124xbf16>
    %c32 = arith.constant 32 : index
    %c0_50 = arith.constant 0 : index
    %67 = vector.load %arg12[%c32, %c0_50] : memref<80x124xbf16, #tpu.memory_space<vmem>>, vector<16x124xbf16>
    tpu.vector_store %arg12[%c32, %c0_50], %66 {strides = array<i32>} : memref<80x124xbf16, #tpu.memory_space<vmem>>, vector<16x124xbf16>,
    %c0_51 = arith.constant 0 : index
    %c3_52 = arith.constant 3 : index
    %68 = vector.load %arg11[%c0_51, %c3_52] : memref<16x128xbf16, #tpu.memory_space<vmem>>, vector<16x124xbf16>
    %c48 = arith.constant 48 : index
    %c0_53 = arith.constant 0 : index
    %69 = vector.load %arg12[%c48, %c0_53] : memref<80x124xbf16, #tpu.memory_space<vmem>>, vector<16x124xbf16>
    tpu.vector_store %arg12[%c48, %c0_53], %68 {strides = array<i32>} : memref<80x124xbf16, #tpu.memory_space<vmem>>, vector<16x124xbf16>,
    %c0_54 = arith.constant 0 : index
    %c4_55 = arith.constant 4 : index
    %70 = vector.load %arg11[%c0_54, %c4_55] : memref<16x128xbf16, #tpu.memory_space<vmem>>, vector<16x124xbf16>
    %c64 = arith.constant 64 : index
    %c0_56 = arith.constant 0 : index
    %71 = vector.load %arg12[%c64, %c0_56] : memref<80x124xbf16, #tpu.memory_space<vmem>>, vector<16x124xbf16>
    tpu.vector_store %arg12[%c64, %c0_56], %70 {strides = array<i32>} : memref<80x124xbf16, #tpu.memory_space<vmem>>, vector<16x124xbf16>,
    %c0_57 = arith.constant 0 : index
    %c0_58 = arith.constant 0 : index
    %72 = vector.load %arg4[%c0_57, %c0_58] : memref<32x80xbf16, #tpu.memory_space<vmem>>, vector<32x80xbf16>
    %c0_59 = arith.constant 0 : index
    %c0_60 = arith.constant 0 : index
    %73 = vector.load %arg12[%c0_59, %c0_60] : memref<80x124xbf16, #tpu.memory_space<vmem>>, vector<80x124xbf16>
    %cst_61 = arith.constant dense<0.000000e+00> : vector<32x124xf32>
    %74 = tpu.matmul %72, %73, %cst_61 {dimension_numbers = #tpu.dot_dimension_numbers<[1], [0], [0], [1], [0, 0, 1, 1], [], []>} : vector<32x80xbf16>, vector<80x124xbf16>, vector<32x124xf32> -> vector<32x124xf32>
    %c0_62 = arith.constant 0 : index
    %c0_63 = arith.constant 0 : index
    %75 = vector.load %arg13[%c0_62, %c0_63] : memref<32x124xf32, #tpu.memory_space<vmem>>, vector<32x124xf32>
    tpu.vector_store %arg13[%c0_62, %c0_63], %74 {strides = array<i32>} : memref<32x124xf32, #tpu.memory_space<vmem>>, vector<32x124xf32>,
    %c0_64 = arith.constant 0 : index
    %c0_65 = arith.constant 0 : index
    %76 = vector.load %arg5[%c0_64, %c0_65] : memref<32x3xf32, #tpu.memory_space<vmem>>, vector<32x3xf32>
    %77 = vector.extract_strided_slice %76 {offsets = [0, 0], sizes = [32, 1], strides = [1, 1]} : vector<32x3xf32> to vector<32x1xf32>
    %78 = vector.extract_strided_slice %76 {offsets = [0, 1], sizes = [32, 1], strides = [1, 1]} : vector<32x3xf32> to vector<32x1xf32>
    %79 = vector.extract_strided_slice %76 {offsets = [0, 2], sizes = [32, 1], strides = [1, 1]} : vector<32x3xf32> to vector<32x1xf32>
    %80 = tpu.iota {dimensions = array<i32: 0>} : vector<15x8xi32>
    %81 = tpu.iota {dimensions = array<i32: 1>} : vector<15x8xi32>
    %c2_i32 = arith.constant 2 : i32
    %82 = vector.broadcast %c2_i32 : i32 to vector<15x8xi32>
    %83 = arith.muli %81, %82 : vector<15x8xi32>
    %84 = arith.cmpi eq, %80, %83 : vector<15x8xi32>
    %cst_66 = arith.constant 1.000000e+00 : f32
    %cst_67 = arith.constant 0.000000e+00 : f32
    %85 = vector.broadcast %cst_66 : f32 to vector<15x8xf32>
    %86 = vector.broadcast %cst_67 : f32 to vector<15x8xf32>
    %87 = arith.select %84, %85, %86 : vector<15x8xi1>, vector<15x8xf32>
    %c0_68 = arith.constant 0 : index
    %c0_69 = arith.constant 0 : index
    %88 = vector.load %arg13[%c0_68, %c0_69] : memref<32x124xf32, #tpu.memory_space<vmem>>, vector<32x15xf32>
    %cst_70 = arith.constant dense<0.000000e+00> : vector<32x8xf32>
    %89 = tpu.matmul %88, %87, %cst_70 {dimension_numbers = #tpu.dot_dimension_numbers<[1], [0], [0], [1], [0, 0, 1, 1], [], []>} : vector<32x15xf32>, vector<15x8xf32>, vector<32x8xf32> -> vector<32x8xf32>
    %90 = vector.broadcast %77 : vector<32x1xf32> to vector<32x8xf32>
    %91 = arith.addf %89, %90 : vector<32x8xf32>
    %92 = vector.shape_cast %91 : vector<32x8xf32> to vector<1x32x8xf32>
    %cst_71 = arith.constant dense<0.000000e+00> : vector<1xf32>
    %93 = vector.multi_reduction <add>, %92, %cst_71 [1, 2] : vector<1x32x8xf32> to vector<1xf32>
    %94 = vector.shape_cast %93 : vector<1xf32> to vector<1x1x1xf32>
    %95 = vector.extract %94[0, 0, 0] : f32 from vector<1x1x1xf32>
    %96 = vector.broadcast %95 : f32 to vector<1x1xf32>
    %cst_72 = arith.constant 3.906250e-03 : f32
    %97 = vector.broadcast %cst_72 : f32 to vector<1x1xf32>
    %98 = arith.mulf %96, %97 : vector<1x1xf32>
    %99 = vector.broadcast %98 : vector<1x1xf32> to vector<32x8xf32>
    %100 = arith.subf %91, %99 : vector<32x8xf32>
    %101 = arith.mulf %100, %100 : vector<32x8xf32>
    %102 = vector.shape_cast %101 : vector<32x8xf32> to vector<1x32x8xf32>
    %cst_73 = arith.constant dense<0.000000e+00> : vector<1xf32>
    %103 = vector.multi_reduction <add>, %102, %cst_73 [1, 2] : vector<1x32x8xf32> to vector<1xf32>
    %104 = vector.shape_cast %103 : vector<1xf32> to vector<1x1x1xf32>
    %105 = vector.extract %104[0, 0, 0] : f32 from vector<1x1x1xf32>
    %106 = vector.broadcast %105 : f32 to vector<1x1xf32>
    %cst_74 = arith.constant 3.906250e-03 : f32
    %107 = vector.broadcast %cst_74 : f32 to vector<1x1xf32>
    %108 = arith.mulf %106, %107 : vector<1x1xf32>
    %cst_75 = arith.constant 9.99999974E-6 : f32
    %109 = vector.broadcast %cst_75 : f32 to vector<1x1xf32>
    %110 = arith.addf %108, %109 : vector<1x1xf32>
    %111 = math.rsqrt %110 : vector<1x1xf32>
    %112 = vector.broadcast %111 : vector<1x1xf32> to vector<32x8xf32>
    %113 = arith.mulf %100, %112 : vector<32x8xf32>
    %114 = vector.broadcast %78 : vector<32x1xf32> to vector<32x8xf32>
    %115 = arith.mulf %113, %114 : vector<32x8xf32>
    %116 = vector.broadcast %79 : vector<32x1xf32> to vector<32x8xf32>
    %117 = arith.addf %115, %116 : vector<32x8xf32>
    %cst_76 = arith.constant 0.000000e+00 : f32
    %118 = vector.broadcast %cst_76 : f32 to vector<32x8xf32>
    %119 = arith.cmpf ogt, %117, %118 : vector<32x8xf32>
    %cst_77 = arith.constant 0.00999999977 : f32
    %120 = vector.broadcast %cst_77 : f32 to vector<32x8xf32>
    %121 = arith.mulf %120, %117 : vector<32x8xf32>
    %122 = arith.select %119, %117, %121 : vector<32x8xi1>, vector<32x8xf32>
    %123 = arith.truncf %122 : vector<32x8xf32> to vector<32x8xbf16>
    %cst_78 = arith.constant 0.000000e+00 : bf16
    %124 = vector.broadcast %cst_78 : bf16 to vector<32x120xbf16>
    %c0_79 = arith.constant 0 : index
    %c8_80 = arith.constant 8 : index
    %125 = vector.load %arg14[%c0_79, %c8_80] : memref<32x128xbf16, #tpu.memory_space<vmem>>, vector<32x120xbf16>
    tpu.vector_store %arg14[%c0_79, %c8_80], %124 {strides = array<i32>} : memref<32x128xbf16, #tpu.memory_space<vmem>>, vector<32x120xbf16>,
    %c0_81 = arith.constant 0 : index
    %c0_82 = arith.constant 0 : index
    %126 = vector.load %arg14[%c0_81, %c0_82] : memref<32x128xbf16, #tpu.memory_space<vmem>>, vector<32x8xbf16>
    tpu.vector_store %arg14[%c0_81, %c0_82], %123 {strides = array<i32>} : memref<32x128xbf16, #tpu.memory_space<vmem>>, vector<32x8xbf16>,
    %c0_83 = arith.constant 0 : index
    %c0_84 = arith.constant 0 : index
    %127 = vector.load %arg6[%c0_83, %c0_84] : memref<8x32xbf16, #tpu.memory_space<vmem>>, vector<8x32xbf16>
    %c0_85 = arith.constant 0 : index
    %c0_86 = arith.constant 0 : index
    %128 = vector.load %arg14[%c0_85, %c0_86] : memref<32x128xbf16, #tpu.memory_space<vmem>>, vector<32x128xbf16>
    %cst_87 = arith.constant dense<0.000000e+00> : vector<8x128xf32>
    %129 = tpu.matmul %127, %128, %cst_87 {dimension_numbers = #tpu.dot_dimension_numbers<[1], [0], [0], [1], [0, 0, 1, 1], [], []>} : vector<8x32xbf16>, vector<32x128xbf16>, vector<8x128xf32> -> vector<8x128xf32>
    %c0_88 = arith.constant 0 : index
    %c0_89 = arith.constant 0 : index
    %130 = vector.load %arg7[%c0_88, %c0_89] : memref<8x1xf32, #tpu.memory_space<vmem>>, vector<8x1xf32>
    %131 = vector.broadcast %130 : vector<8x1xf32> to vector<8x128xf32>
    %132 = arith.addf %129, %131 : vector<8x128xf32>
    %c0_90 = arith.constant 0 : index
    %c0_91 = arith.constant 0 : index
    %c0_92 = arith.constant 0 : index
    %133 = vector.load %arg8[%c0_90, %c0_91, %c0_92] : memref<1x8x128xf32, #tpu.memory_space<vmem>>, vector<1x8x128xf32>
    %134 = vector.shape_cast %133 : vector<1x8x128xf32> to vector<8x128xf32>
    %135 = vector.shape_cast %132 : vector<8x128xf32> to vector<1x8x128xf32>
    tpu.vector_store %arg8[%c0_90, %c0_91, %c0_92], %135 {strides = array<i32>} : memref<1x8x128xf32, #tpu.memory_space<vmem>>, vector<1x8x128xf32>,
    return
  }
  func.func @transform_0(%arg0: i32) -> (i32, i32, i32) {
    %c0_i32 = arith.constant 0 : i32
    %c0_i32_0 = arith.constant 0 : i32
    %c0_i32_1 = arith.constant 0 : i32
    return %arg0, %c0_i32, %c0_i32_0 : i32, i32, i32
  }
  func.func @transform_1(%arg0: i32) -> (i32, i32) {
    %c0_i32 = arith.constant 0 : i32
    %c0_i32_0 = arith.constant 0 : i32
    %c0_i32_1 = arith.constant 0 : i32
    return %c0_i32, %c0_i32_0 : i32, i32
  }
  func.func @transform_2(%arg0: i32) -> (i32, i32) {
    %c0_i32 = arith.constant 0 : i32
    %c0_i32_0 = arith.constant 0 : i32
    %c0_i32_1 = arith.constant 0 : i32
    return %c0_i32, %c0_i32_0 : i32, i32
  }
  func.func @transform_3(%arg0: i32) -> (i32, i32) {
    %c0_i32 = arith.constant 0 : i32
    %c0_i32_0 = arith.constant 0 : i32
    %c0_i32_1 = arith.constant 0 : i32
    return %c0_i32, %c0_i32_0 : i32, i32
  }
  func.func @transform_4(%arg0: i32) -> (i32, i32) {
    %c0_i32 = arith.constant 0 : i32
    %c0_i32_0 = arith.constant 0 : i32
    %c0_i32_1 = arith.constant 0 : i32
    return %c0_i32, %c0_i32_0 : i32, i32
  }
  func.func @transform_5(%arg0: i32) -> (i32, i32) {
    %c0_i32 = arith.constant 0 : i32
    %c0_i32_0 = arith.constant 0 : i32
    %c0_i32_1 = arith.constant 0 : i32
    return %c0_i32, %c0_i32_0 : i32, i32
  }
  func.func @transform_6(%arg0: i32) -> (i32, i32) {
    %c0_i32 = arith.constant 0 : i32
    %c0_i32_0 = arith.constant 0 : i32
    %c0_i32_1 = arith.constant 0 : i32
    return %c0_i32, %c0_i32_0 : i32, i32
  }
  func.func @transform_7(%arg0: i32) -> (i32, i32, i32) {
    %c0_i32 = arith.constant 0 : i32
    %c0_i32_0 = arith.constant 0 : i32
    %c0_i32_1 = arith.constant 0 : i32
    return %arg0, %c0_i32, %c0_i32_0 : i32, i32, i32
  }
}

</mosaic_0001>

<llo_original>
// kernel: tpu_custom_call.1
$region0: #{tpu_custom_call.1}
  #allocation0 [shape = 'u32[]', space=smem, size = 0x4, offset = 0x4, fixed_abs, tag = 'smem constant byte address 0x4 - core index']
  #allocation1 [shape = 'u32[72,128]{1,0:T(1,128)}', space=vmem, size = 0x9000, scoped, tag = 'internal scratch']
  #allocation2 [shape = 'bf16[20,124]{1,0:T(8,128)(2,1)}', space=vmem, size = 0x1800, scoped, tag = 'scratch operand']
  #allocation3 [shape = 'f32[16,124]{1,0:T(8,128)}', space=vmem, size = 0x2000, scoped, tag = 'scratch operand']
  #allocation4 [shape = 'bf16[16,128]{1,0:T(8,128)(2,1)}', space=vmem, size = 0x1000, scoped, tag = 'scratch operand']
  #allocation5 [shape = 'bf16[80,124]{1,0:T(8,128)(2,1)}', space=vmem, size = 0x5000, scoped, tag = 'scratch operand']
  #allocation6 [shape = 'f32[32,124]{1,0:T(8,128)}', space=vmem, size = 0x4000, scoped, tag = 'scratch operand']
  #allocation7 [shape = 'bf16[32,128]{1,0:T(8,128)(2,1)}', space=vmem, size = 0x2000, scoped, tag = 'scratch operand']
  %s0 = inlined_call_operand.vmem [shape: bf16[2,4,128], index: 0, kind: input, shape index: {}]
  %s1 = inlined_call_operand.vmem [shape: bf16[16,20], index: 1, kind: input, shape index: {}]
  %s2 = inlined_call_operand.vmem [shape: f32[16,3], index: 2, kind: input, shape index: {}]
  %s3 = inlined_call_operand.vmem [shape: bf16[32,80], index: 3, kind: input, shape index: {}]
  %s4 = inlined_call_operand.vmem [shape: f32[32,3], index: 4, kind: input, shape index: {}]
  %s5 = inlined_call_operand.vmem [shape: bf16[8,32], index: 5, kind: input, shape index: {}]
  %s6 = inlined_call_operand.vmem [shape: f32[8,1], index: 6, kind: input, shape index: {}]
  %s7 = inlined_call_operand.hbm [shape: f32[2,8,128], index: 7, kind: output, shape index: {}]
  %s8 = sld [smem:[#allocation0]]
  $region61: #{tpu_custom_call.1} parent=0
    _
  %s10 = ssub.s32 1, %s8
  %s11 = scalar_select 0, %s10, %s8
  $region1: #{tpu_custom_call.1} parent=0
    #allocation8 [shape = 'u8[8192]{0}', space=vmem, size = 0x2000, scoped, tag = 'output window, operand 0']
    #allocation9 [shape = 's32[2]{0}', space=sflag, size = 0x8, scoped, tag = 'scoped memory for tpu_custom_call.1']
    %12 = vsyncpa [#allocation9], 0
    %s13 = scalar_lea.sflag [#allocation9], 1
    %14 = vsyncpa %s13, 0
    loop: start=0, step=1, limit=4
    $region2: #{tpu_custom_call.1} parent=1 // loop_pre_header
      _
    $region3: #{tpu_custom_call.1} parent=1 // loop_header
      %s16 = sphi 0, %s20
      %p17 = scmp.ge.s32.totalorder %s16, 4
      %s26 = sphi 0, %s28
      %s29 = sphi 0, %s26
      %s30 = sphi 0, %s29
      %s46 = sphi 0, %s30
      %s50 = sphi 0, %s50
      %s52 = sphi 0, %s50
      %s53 = sphi 0, %s52
      %s67 = sphi 0, %s53
      %s71 = sphi 0, %s71
      %s73 = sphi 0, %s71
      %s74 = sphi 0, %s73
      %s88 = sphi 0, %s74
      %s92 = sphi 0, %s92
      %s94 = sphi 0, %s92
      %s95 = sphi 0, %s94
      %s109 = sphi 0, %s95
      %s113 = sphi 0, %s113
      %s115 = sphi 0, %s113
      %s116 = sphi 0, %s115
      %s130 = sphi 0, %s116
      %s134 = sphi 0, %s134
      %s136 = sphi 0, %s134
      %s137 = sphi 0, %s136
      %s151 = sphi 0, %s137
      %s155 = sphi 0, %s155
      %s157 = sphi 0, %s155
      %s158 = sphi 0, %s157
      %s172 = sphi 0, %s158
      %s178 = sphi 0, %s180
      %s181 = sphi 0, %s178
      %s182 = sphi 0, %s181
      %s198 = sphi 0, %s182
    $region4: #{tpu_custom_call.1} parent=1 // loop_header_branch
      %19 = sbr.rel (%p17) target = $region8
    $region5: #{tpu_custom_call.1} parent=1 // loop_body
      %s21 = ssub.s32 %s16, 1
      %s22 = ssub.s32 %s16, 2
      %s23 = sadd.s32 %s16, 1
      %s24 = ssub.s32 %s16, %s23
      %p25 = scmp.eq.s32.totalorder %s24, 0
      %s27 = sadd.s32 %s26, 1
      %s28 = scalar_select %p25, %s26, %s27
      %p31 = pneg %p25
      %p32 = scmp.eq.s32.totalorder %s16, 1
      %p33 = por %p31, %p32
      %p34 = scmp.ne.s32.totalorder %s26, %s29
      %p35 = scmp.eq.s32.totalorder %s16, 0
      %p36 = por %p34, %p35
      %p37 = scmp.ne.s32.totalorder %s26, %s29
      %p38 = scmp.eq.s32.totalorder %s21, 1
      %p39 = por %p37, %p38
      %p40 = scmp.ne.s32.totalorder %s29, %s30
      %p41 = scmp.eq.s32.totalorder %s21, 0
      %p42 = por %p40, %p41
      %p43 = scmp.ne.s32.totalorder %s29, %s30
      %p44 = scmp.eq.s32.totalorder %s22, 1
      %p45 = por %p43, %p44
      %p47 = scmp.ne.s32.totalorder %s30, %s46
      %p48 = scmp.eq.s32.totalorder %s22, 0
      %p49 = por %p47, %p48
      %s51 = sadd.s32 %s50, 1
      %p54 = scmp.eq.s32.totalorder %s16, 1
      %p55 = scmp.ne.s32.totalorder %s50, %s52
      %p56 = scmp.eq.s32.totalorder %s16, 0
      %p57 = por %p55, %p56
      %p58 = scmp.ne.s32.totalorder %s50, %s52
      %p59 = scmp.eq.s32.totalorder %s21, 1
      %p60 = por %p58, %p59
      %p61 = scmp.ne.s32.totalorder %s52, %s53
      %p62 = scmp.eq.s32.totalorder %s21, 0
      %p63 = por %p61, %p62
      %p64 = scmp.ne.s32.totalorder %s52, %s53
      %p65 = scmp.eq.s32.totalorder %s22, 1
      %p66 = por %p64, %p65
      %p68 = scmp.ne.s32.totalorder %s53, %s67
      %p69 = scmp.eq.s32.totalorder %s22, 0
      %p70 = por %p68, %p69
      %s72 = sadd.s32 %s71, 1
      %p75 = scmp.eq.s32.totalorder %s16, 1
      %p76 = scmp.ne.s32.totalorder %s71, %s73
      %p77 = scmp.eq.s32.totalorder %s16, 0
      %p78 = por %p76, %p77
      %p79 = scmp.ne.s32.totalorder %s71, %s73
      %p80 = scmp.eq.s32.totalorder %s21, 1
      %p81 = por %p79, %p80
      %p82 = scmp.ne.s32.totalorder %s73, %s74
      %p83 = scmp.eq.s32.totalorder %s21, 0
      %p84 = por %p82, %p83
      %p85 = scmp.ne.s32.totalorder %s73, %s74
      %p86 = scmp.eq.s32.totalorder %s22, 1
      %p87 = por %p85, %p86
      %p89 = scmp.ne.s32.totalorder %s74, %s88
      %p90 = scmp.eq.s32.totalorder %s22, 0
      %p91 = por %p89, %p90
      %s93 = sadd.s32 %s92, 1
      %p96 = scmp.eq.s32.totalorder %s16, 1
      %p97 = scmp.ne.s32.totalorder %s92, %s94
      %p98 = scmp.eq.s32.totalorder %s16, 0
      %p99 = por %p97, %p98
      %p100 = scmp.ne.s32.totalorder %s92, %s94
      %p101 = scmp.eq.s32.totalorder %s21, 1
      %p102 = por %p100, %p101
      %p103 = scmp.ne.s32.totalorder %s94, %s95
      %p104 = scmp.eq.s32.totalorder %s21, 0
      %p105 = por %p103, %p104
      %p106 = scmp.ne.s32.totalorder %s94, %s95
      %p107 = scmp.eq.s32.totalorder %s22, 1
      %p108 = por %p106, %p107
      %p110 = scmp.ne.s32.totalorder %s95, %s109
      %p111 = scmp.eq.s32.totalorder %s22, 0
      %p112 = por %p110, %p111
      %s114 = sadd.s32 %s113, 1
      %p117 = scmp.eq.s32.totalorder %s16, 1
      %p118 = scmp.ne.s32.totalorder %s113, %s115
      %p119 = scmp.eq.s32.totalorder %s16, 0
      %p120 = por %p118, %p119
      %p121 = scmp.ne.s32.totalorder %s113, %s115
      %p122 = scmp.eq.s32.totalorder %s21, 1
      %p123 = por %p121, %p122
      %p124 = scmp.ne.s32.totalorder %s115, %s116
      %p125 = scmp.eq.s32.totalorder %s21, 0
      %p126 = por %p124, %p125
      %p127 = scmp.ne.s32.totalorder %s115, %s116
      %p128 = scmp.eq.s32.totalorder %s22, 1
      %p129 = por %p127, %p128
      %p131 = scmp.ne.s32.totalorder %s116, %s130
      %p132 = scmp.eq.s32.totalorder %s22, 0
      %p133 = por %p131, %p132
      %s135 = sadd.s32 %s134, 1
      %p138 = scmp.eq.s32.totalorder %s16, 1
      %p139 = scmp.ne.s32.totalorder %s134, %s136
      %p140 = scmp.eq.s32.totalorder %s16, 0
      %p141 = por %p139, %p140
      %p142 = scmp.ne.s32.totalorder %s134, %s136
      %p143 = scmp.eq.s32.totalorder %s21, 1
      %p144 = por %p142, %p143
      %p145 = scmp.ne.s32.totalorder %s136, %s137
      %p146 = scmp.eq.s32.totalorder %s21, 0
      %p147 = por %p145, %p146
      %p148 = scmp.ne.s32.totalorder %s136, %s137
      %p149 = scmp.eq.s32.totalorder %s22, 1
      %p150 = por %p148, %p149
      %p152 = scmp.ne.s32.totalorder %s137, %s151
      %p153 = scmp.eq.s32.totalorder %s22, 0
      %p154 = por %p152, %p153
      %s156 = sadd.s32 %s155, 1
      %p159 = scmp.eq.s32.totalorder %s16, 1
      %p160 = scmp.ne.s32.totalorder %s155, %s157
      %p161 = scmp.eq.s32.totalorder %s16, 0
      %p162 = por %p160, %p161
      %p163 = scmp.ne.s32.totalorder %s155, %s157
      %p164 = scmp.eq.s32.totalorder %s21, 1
      %p165 = por %p163, %p164
      %p166 = scmp.ne.s32.totalorder %s157, %s158
      %p167 = scmp.eq.s32.totalorder %s21, 0
      %p168 = por %p166, %p167
      %p169 = scmp.ne.s32.totalorder %s157, %s158
      %p170 = scmp.eq.s32.totalorder %s22, 1
      %p171 = por %p169, %p170
      %p173 = scmp.ne.s32.totalorder %s158, %s172
      %p174 = scmp.eq.s32.totalorder %s22, 0
      %p175 = por %p173, %p174
      %s176 = ssub.s32 %s16, %s23
      %p177 = scmp.eq.s32.totalorder %s176, 0
      %s179 = sadd.s32 %s178, 1
      %s180 = scalar_select %p177, %s178, %s179
      %p183 = pneg %p177
      %p184 = scmp.eq.s32.totalorder %s16, 1
      %p185 = por %p183, %p184
      %p186 = scmp.ne.s32.totalorder %s178, %s181
      %p187 = scmp.eq.s32.totalorder %s16, 0
      %p188 = por %p186, %p187
      %p189 = scmp.ne.s32.totalorder %s178, %s181
      %p190 = scmp.eq.s32.totalorder %s21, 1
      %p191 = por %p189, %p190
      %p192 = scmp.ne.s32.totalorder %s181, %s182
      %p193 = scmp.eq.s32.totalorder %s21, 0
      %p194 = por %p192, %p193
      %p195 = scmp.ne.s32.totalorder %s181, %s182
      %p196 = scmp.eq.s32.totalorder %s22, 1
      %p197 = por %p195, %p196
      %p199 = scmp.ne.s32.totalorder %s182, %s198
      %p200 = scmp.eq.s32.totalorder %s22, 0
      %p201 = por %p199, %p200
      %p202 = scmp.le.s32.totalorder 1, %s16
      %p203 = scmp.lt.s32.totalorder %s16, 3
      %p204 = pnand %p202, %p203
      %p205 = pneg %p204
      // Predicated region
      $region9: #{tpu_custom_call.1} parent=5 // pred_check
        _
      $region10: #{tpu_custom_call.1} parent=5 // pred_check_branch
        %207 = sbr.rel (%p204) target = $region12
      $region11: #{tpu_custom_call.1} parent=5 // pred_region
        %s208 = ssub.s32 %s16, 1
        // Predicated region
        $region13: #{tpu_custom_call.1} parent=11 // pred_check
          %p209 = pneg %p63
        $region14: #{tpu_custom_call.1} parent=11 // pred_check_branch
          %211 = sbr.rel (%p209) target = $region16
        $region15: #{tpu_custom_call.1} parent=11 // pred_region
          _
        $region16: #{tpu_custom_call.1} parent=11 // pred_fallthru
          _
        // Predicated region
        $region17: #{tpu_custom_call.1} parent=11 // pred_check
          %p212 = pneg %p84
        $region18: #{tpu_custom_call.1} parent=11 // pred_check_branch
          %214 = sbr.rel (%p212) target = $region20
        $region19: #{tpu_custom_call.1} parent=11 // pred_region
          _
        $region20: #{tpu_custom_call.1} parent=11 // pred_fallthru
          _
        // Predicated region
        $region21: #{tpu_custom_call.1} parent=11 // pred_check
          %p215 = pneg %p105
        $region22: #{tpu_custom_call.1} parent=11 // pred_check_branch
          %217 = sbr.rel (%p215) target = $region24
        $region23: #{tpu_custom_call.1} parent=11 // pred_region
          _
        $region24: #{tpu_custom_call.1} parent=11 // pred_fallthru
          _
        // Predicated region
        $region25: #{tpu_custom_call.1} parent=11 // pred_check
          %p218 = pneg %p126
        $region26: #{tpu_custom_call.1} parent=11 // pred_check_branch
          %220 = sbr.rel (%p218) target = $region28
        $region27: #{tpu_custom_call.1} parent=11 // pred_region
          _
        $region28: #{tpu_custom_call.1} parent=11 // pred_fallthru
          _
        // Predicated region
        $region29: #{tpu_custom_call.1} parent=11 // pred_check
          %p221 = pneg %p147
        $region30: #{tpu_custom_call.1} parent=11 // pred_check_branch
          %223 = sbr.rel (%p221) target = $region32
        $region31: #{tpu_custom_call.1} parent=11 // pred_region
          _
        $region32: #{tpu_custom_call.1} parent=11 // pred_fallthru
          _
        // Predicated region
        $region33: #{tpu_custom_call.1} parent=11 // pred_check
          %p224 = pneg %p168
        $region34: #{tpu_custom_call.1} parent=11 // pred_check_branch
          %226 = sbr.rel (%p224) target = $region36
        $region35: #{tpu_custom_call.1} parent=11 // pred_region
          _
        $region36: #{tpu_custom_call.1} parent=11 // pred_fallthru
          _
      $region12: #{tpu_custom_call.1} parent=5 // pred_fallthru
        _
      %p227 = scmp.lt.s32.totalorder %s16, 2
      // Predicated region
      $region37: #{tpu_custom_call.1} parent=5 // pred_check
        %p228 = pneg %p227
      $region38: #{tpu_custom_call.1} parent=5 // pred_check_branch
        %230 = sbr.rel (%p228) target = $region40
      $region39: #{tpu_custom_call.1} parent=5 // pred_region
        // Predicated region
        $region41: #{tpu_custom_call.1} parent=39 // pred_check
          %p231 = pneg %p36
        $region42: #{tpu_custom_call.1} parent=39 // pred_check_branch
          %233 = sbr.rel (%p231) target = $region44
        $region43: #{tpu_custom_call.1} parent=39 // pred_region
          %p234 = scmp.lt.s32.totalorder %s16, 1
          %s235 = scalar_select %p234, %s16, 1
          %s236 = smul.addr %s235, 2
          %s237 = scalar_lea.vmem %s0, %s236
        $region44: #{tpu_custom_call.1} parent=39 // pred_fallthru
          _
      $region40: #{tpu_custom_call.1} parent=5 // pred_fallthru
        _
      %p238 = scmp.le.s32.totalorder 1, %s16
      %p239 = scmp.lt.s32.totalorder %s16, 3
      %p240 = pnand %p238, %p239
      %p241 = pneg %p240
      // Predicated region
      $region45: #{tpu_custom_call.1} parent=5 // pred_check
        _
      $region46: #{tpu_custom_call.1} parent=5 // pred_check_branch
        %243 = sbr.rel (%p240) target = $region48
      $region47: #{tpu_custom_call.1} parent=5 // pred_region
        %s244 = ssub.s32 %s16, 1
        %p245 = scmp.lt.s32.totalorder %s21, 1
        %s246 = scalar_select %p245, %s21, 1
        %s247 = smul.addr %s246, 2
        %s248 = scalar_lea.vmem %s0, %s247
        %p249 = pneg %p42
        %p250 = pneg %p39
        %p251 = pneg %p63
        %p252 = pneg %p60
        %p253 = pneg %p84
        %p254 = pneg %p81
        %p255 = pneg %p105
        %p256 = pneg %p102
        %p257 = pneg %p126
        %p258 = pneg %p123
        %p259 = pneg %p147
        %p260 = pneg %p144
        %p261 = pneg %p168
        %p262 = pneg %p165
        %p263 = pneg %p194
        %p264 = pneg %p191
        %s265 = sand.u32 %s181, 1
        %s266 = scalar_lea.sflag [#allocation9], %s265
        %s267 = sand.u32 %s181, 1
        %s268 = smul.addr %s267, 8
        %s269 = scalar_lea.vmem [#allocation8], %s268
        %p270 = scmp.lt.s32.totalorder %s21, 1
        %s271 = scalar_select %p270, %s21, 1
        %s272 = smul.addr %s271, 2
        %s273 = scalar_lea.vmem %s0, %s272
        %v275 = vld [vmem:[%s273] sm:$0x3]
        %vm276 = vcmask 1008640
        %277 = vst.msk [vmem:[#allocation2] sm:$0x3] %vm276, %v275
        %v278 = vld [vmem:[%s273] sm:$0x3]
        %s280 = scalar_lea.vmem [#allocation1], 1
        %281 = vst [vmem:[%s280] ss:$2 sm:$0xff] %v278
        %v282 = vld.sshfl [vmem:[#allocation1] sm:$0xff pattern:$0x75643120]
        %284 = vrot.lane.b32.xlu0 %v282, 127
        %v285 = vpop.permute.xlu0 %284
        %vm287 = vcmask 1010690
        %288 = vst.msk [vmem:[#allocation2] sm:$0xc] %vm287, %v285
        %v289 = vld [vmem:[%s273] sm:$0x3]
        %291 = vst [vmem:[#allocation1] ss:$2 sm:$0xff] %v289
        %v292 = vld.sshfl [vmem:[#allocation1] sm:$0xff pattern:$0x75643120]
        %294 = vrot.lane.b32.xlu0 %v292, 126
        %v295 = vpop.permute.xlu0 %294
        %297 = vst.msk [vmem:[#allocation2 + $0x4] sm:$0x3] %vm276, %v295
        %v298 = vld [vmem:[%s273] sm:$0x3]
        %s300 = scalar_lea.vmem [#allocation1], 1
        %301 = vst [vmem:[%s300] ss:$2 sm:$0xff] %v298
        %v302 = vld.sshfl [vmem:[#allocation1] sm:$0xff pattern:$0x75643120]
        %304 = vrot.lane.b32.xlu0 %v302, 125
        %v305 = vpop.permute.xlu0 %304
        %307 = vst.msk [vmem:[#allocation2 + $0x4] sm:$0xc] %vm287, %v305
        %v308 = vld [vmem:[%s273] sm:$0x3]
        %310 = vst [vmem:[#allocation1] ss:$2 sm:$0xff] %v308
        %v311 = vld.sshfl [vmem:[#allocation1] sm:$0xff pattern:$0x75643120]
        %313 = vrot.lane.b32.xlu0 %v311, 124
        %v314 = vpop.permute.xlu0 %313
        %316 = vst.msk [vmem:[#allocation2 + $0x8] sm:$0x3] %vm276, %v314
        %v317 = vld [vmem:[%s1] sm:$0xf]
        %v318 = vld [vmem:[%s1 + $0x4] sm:$0xf]
        %v319 = vld [vmem:[#allocation2] sm:$0xf]
        %v320 = vld [vmem:[#allocation2 + $0x4] sm:$0xf]
        %v321 = vld [vmem:[#allocation2 + $0x8] sm:$0x3]
        %v324 = vunpack.c.l.b16 %v317
        %v325 = vunpack.c.l.b16 %v318
        %v326 = vpack.c.b16 %v325, %v324
        %v330 = vunpack.c.l.b16 %v319
        %v331 = vunpack.c.l.b16 %v320
        %v332 = vunpack.c.l.b16 %v321
        %v333 = vpack.c.b16 %v331, %v330
        %v334 = vpack.c.b16 %v332, %v332
        %vm336 = vcmask 162816
        %v338 = vsel %vm336, %v326, 0
        %vm340 = vcmask 1041408
        %v342 = vsel %vm340, %v334, 0
        %344 = vmatpush.bf16.msra.mxu0 0
        %345 = vmatpush.bf16.msra.mxu0 0
        %346 = vmatpush.bf16.msra.mxu0 0
        %347 = vmatpush.bf16.msra.mxu0 0
        %348 = vmatpush.bf16.msra.mxu0 0
        %349 = vmatpush.bf16.msra.mxu0 0
        %350 = vmatpush.bf16.msra.mxu0 %v342
        %351 = vmatpush.bf16.msra.mxu0 %v333
        %352 = vmatmul.bf16.gmra.mxu0 %v338
        %v353 = vpop.f32.mrf.mxu0
        %v354 = vadd.f32 0.0, %v353
        %v355 = vpop.f32.mrf.mxu0
        %v356 = vadd.f32 0.0, %v355
        %357 = vdwg.mxu0
        %vm358 = vcmask 1014784
        %359 = vst.msk [vmem:[#allocation3] sm:$0xff] %vm358, %v354
        %360 = vst.msk [vmem:[#allocation3 + $0x8] sm:$0xff] %vm358, %v356
        %v361 = vld [vmem:[%s2] sm:$0xff]
        %v362 = vld [vmem:[%s2 + $0x8] sm:$0xff]
        %v363 = vld [vmem:[#allocation3] sm:$0xff]
        %v364 = vld [vmem:[#allocation3 + $0x8] sm:$0xff]
        %366 = vset.pattern.permute.xlu0 0
        %367 = vperm.xlu0 %366, %v361
        %v368 = vpop.permute.xlu0 %367
        %371 = vset.pattern.permute.xlu0 0
        %372 = vperm.xlu0 %371, %v362
        %v373 = vpop.permute.xlu0 %372
        %v375 = vadd.f32 %v363, %v368
        %v376 = vadd.f32 %v364, %v373
        %vm377 = vcmask 130048
        %v378 = vsel %vm377, %v375, 0.0
        %v379 = vsel %vm377, %v376, 0.0
        %v380 = vadd.f32 %v378, %v379
        %381 = vadd.xlane.f32.xlu0 %v380
        %v382 = vpop.xlane.xlu0 %381
        %v383 = vrot.slane %v382, 4
        %v384 = vadd.f32 %v382, %v383
        %v385 = vrot.slane %v384, 2
        %v386 = vadd.f32 %v384, %v385
        %v387 = vrot.slane %v386, 1
        %v388 = vadd.f32 %v386, %v387
        %s389 = vtos %v388
        %v390 = vstv %s389
        %v391 = vmul.f32 %v390, 0.00390625
        %v392 = vsub.f32 %v375, %v391
        %v393 = vsub.f32 %v376, %v391
        %v394 = vmul.f32 %v392, %v392
        %v395 = vmul.f32 %v393, %v393
        %v396 = vsel %vm377, %v394, 0.0
        %v397 = vsel %vm377, %v395, 0.0
        %v398 = vadd.f32 %v396, %v397
        %399 = vadd.xlane.f32.xlu0 %v398
        %v400 = vpop.xlane.xlu0 %399
        %v401 = vrot.slane %v400, 4
        %v402 = vadd.f32 %v400, %v401
        %v403 = vrot.slane %v402, 2
        %v404 = vadd.f32 %v402, %v403
        %v405 = vrot.slane %v404, 1
        %v406 = vadd.f32 %v404, %v405
        %s407 = vtos %v406
        %v408 = vstv %s407
        %v409 = vmul.f32 %v408, 0.00390625
        %v410 = vadd.f32 %v409, 1e-05
        %v411 = vrsqrt.pop %v410
        %v412 = vmul.f32 %v411, %v410
        %v413 = vmul.f32 %v412, %v411
        %v414 = vmul.f32 0.5, %v413
        %v415 = vsub.f32 1.5, %v414
        %v416 = vmul.f32 %v411, %v415
        %vm417 = vweird.f32 %v410
        %vm418 = vweird.f32 %v411
        %vm419 = vmor %vm417, %vm418
        %v420 = vsel %vm419, %v411, %v416
        %v421 = vmul.f32 %v392, %v420
        %v422 = vmul.f32 %v393, %v420
        %423 = vset.pattern.permute.xlu0 1
        %424 = vperm.xlu0 %423, %v361
        %v425 = vpop.permute.xlu0 %424
        %427 = vset.pattern.permute.xlu0 1
        %428 = vperm.xlu0 %427, %v362
        %v429 = vpop.permute.xlu0 %428
        %v431 = vmul.f32 %v421, %v425
        %v432 = vmul.f32 %v422, %v429
        %433 = vset.pattern.permute.xlu0 2
        %434 = vperm.xlu0 %433, %v361
        %v435 = vpop.permute.xlu0 %434
        %437 = vset.pattern.permute.xlu0 2
        %438 = vperm.xlu0 %437, %v362
        %v439 = vpop.permute.xlu0 %438
        %v441 = vadd.f32 %v431, %v435
        %v442 = vadd.f32 %v432, %v439
        %vm443 = vcmp.gt.f32.partialorder %v441, 0.0
        %vm444 = vcmp.gt.f32.partialorder %v442, 0.0
        %v445 = vmul.f32 %v441, 0.01
        %v446 = vmul.f32 %v442, 0.01
        %v447 = vsel %vm443, %v441, %v445
        %v448 = vsel %vm444, %v442, %v446
        %v449 = vpack.c.bf16 %v447, %v447
        %v450 = vpack.c.bf16 %v448, %v448
        %vm451 = vcmask 11264
        %452 = vst.msk [vmem:[#allocation4] sm:$0xf] %vm451, 0
        %453 = vst.msk [vmem:[#allocation4 + $0x4] sm:$0xf] %vm451, 0
        %vm454 = vcmask 158864
        %455 = vst.msk [vmem:[#allocation4] sm:$0xf] %vm454, 0
        %456 = vst.msk [vmem:[#allocation4 + $0x4] sm:$0xf] %vm454, 0
        %459 = vrot.lane.b32.xlu0 %v449, 2
        %v460 = vpop.permute.xlu0 %459
        %461 = vrot.lane.b32.xlu0 %v450, 2
        %v462 = vpop.permute.xlu0 %461
        %vm465 = vcmask 142352
        %466 = vst.msk [vmem:[#allocation4] sm:$0xf] %vm465, %v460
        %467 = vst.msk [vmem:[#allocation4 + $0x4] sm:$0xf] %vm465, %v462
        %v468 = vld [vmem:[#allocation4] sm:$0xf]
        %v469 = vld [vmem:[#allocation4 + $0x4] sm:$0xf]
        %vm470 = vcmask 1010688
        %471 = vst.msk [vmem:[#allocation5] sm:$0xf] %vm470, %v468
        %472 = vst.msk [vmem:[#allocation5 + $0x4] sm:$0xf] %vm470, %v469
        %v473 = vld [vmem:[#allocation4] sm:$0xf]
        %v474 = vld [vmem:[#allocation4 + $0x4] sm:$0xf]
        %477 = vrot.lane.b32.xlu0 %v473, 127
        %v478 = vpop.permute.xlu0 %477
        %479 = vrot.lane.b32.xlu0 %v474, 127
        %v480 = vpop.permute.xlu0 %479
        %483 = vst.msk [vmem:[#allocation5 + $0x8] sm:$0xf] %vm470, %v478
        %484 = vst.msk [vmem:[#allocation5 + $0xc] sm:$0xf] %vm470, %v480
        %v485 = vld [vmem:[#allocation4] sm:$0xf]
        %v486 = vld [vmem:[#allocation4 + $0x4] sm:$0xf]
        %489 = vrot.lane.b32.xlu0 %v485, 126
        %v490 = vpop.permute.xlu0 %489
        %491 = vrot.lane.b32.xlu0 %v486, 126
        %v492 = vpop.permute.xlu0 %491
        %495 = vst.msk [vmem:[#allocation5 + $0x10] sm:$0xf] %vm470, %v490
        %496 = vst.msk [vmem:[#allocation5 + $0x14] sm:$0xf] %vm470, %v492
        %v497 = vld [vmem:[#allocation4] sm:$0xf]
        %v498 = vld [vmem:[#allocation4 + $0x4] sm:$0xf]
        %501 = vrot.lane.b32.xlu0 %v497, 125
        %v502 = vpop.permute.xlu0 %501
        %503 = vrot.lane.b32.xlu0 %v498, 125
        %v504 = vpop.permute.xlu0 %503
        %507 = vst.msk [vmem:[#allocation5 + $0x18] sm:$0xf] %vm470, %v502
        %508 = vst.msk [vmem:[#allocation5 + $0x1c] sm:$0xf] %vm470, %v504
        %v509 = vld [vmem:[#allocation4] sm:$0xf]
        %v510 = vld [vmem:[#allocation4 + $0x4] sm:$0xf]
        %513 = vrot.lane.b32.xlu0 %v509, 124
        %v514 = vpop.permute.xlu0 %513
        %515 = vrot.lane.b32.xlu0 %v510, 124
        %v516 = vpop.permute.xlu0 %515
        %519 = vst.msk [vmem:[#allocation5 + $0x20] sm:$0xf] %vm470, %v514
        %520 = vst.msk [vmem:[#allocation5 + $0x24] sm:$0xf] %vm470, %v516
        %v521 = vld [vmem:[%s3] sm:$0xf]
        %v522 = vld [vmem:[%s3 + $0x4] sm:$0xf]
        %v523 = vld [vmem:[%s3 + $0x8] sm:$0xf]
        %v524 = vld [vmem:[%s3 + $0xc] sm:$0xf]
        %v525 = vld [vmem:[#allocation5] sm:$0xf]
        %v526 = vld [vmem:[#allocation5 + $0x4] sm:$0xf]
        %v527 = vld [vmem:[#allocation5 + $0x8] sm:$0xf]
        %v528 = vld [vmem:[#allocation5 + $0xc] sm:$0xf]
        %v529 = vld [vmem:[#allocation5 + $0x10] sm:$0xf]
        %v530 = vld [vmem:[#allocation5 + $0x14] sm:$0xf]
        %v531 = vld [vmem:[#allocation5 + $0x18] sm:$0xf]
        %v532 = vld [vmem:[#allocation5 + $0x1c] sm:$0xf]
        %v533 = vld [vmem:[#allocation5 + $0x20] sm:$0xf]
        %v534 = vld [vmem:[#allocation5 + $0x24] sm:$0xf]
        %v539 = vunpack.c.l.b16 %v521
        %v540 = vunpack.c.l.b16 %v522
        %v541 = vunpack.c.l.b16 %v523
        %v542 = vunpack.c.l.b16 %v524
        %v543 = vpack.c.b16 %v540, %v539
        %v544 = vpack.c.b16 %v542, %v541
        %v555 = vunpack.c.l.b16 %v525
        %v556 = vunpack.c.l.b16 %v526
        %v557 = vunpack.c.l.b16 %v527
        %v558 = vunpack.c.l.b16 %v528
        %v559 = vunpack.c.l.b16 %v529
        %v560 = vunpack.c.l.b16 %v530
        %v561 = vunpack.c.l.b16 %v531
        %v562 = vunpack.c.l.b16 %v532
        %v563 = vunpack.c.l.b16 %v533
        %v564 = vunpack.c.l.b16 %v534
        %v565 = vpack.c.b16 %v556, %v555
        %v566 = vpack.c.b16 %v558, %v557
        %v567 = vpack.c.b16 %v560, %v559
        %v568 = vpack.c.b16 %v562, %v561
        %v569 = vpack.c.b16 %v564, %v563
        %vm575 = vcmask 654336
        %v577 = vsel %vm575, %v543, 0
        %v580 = vsel %vm575, %v544, 0
        %582 = vmatpush.bf16.msra.mxu0 0
        %583 = vmatpush.bf16.msra.mxu0 0
        %584 = vmatpush.bf16.msra.mxu0 0
        %585 = vmatpush.bf16.msra.mxu0 %v569
        %586 = vmatpush.bf16.msra.mxu0 %v568
        %587 = vmatpush.bf16.msra.mxu0 %v567
        %588 = vmatpush.bf16.msra.mxu0 %v566
        %589 = vmatpush.bf16.msra.mxu0 %v565
        %590 = vmatmul.bf16.gmra.mxu0 %v577
        %v591 = vpop.f32.mrf.mxu0
        %v592 = vadd.f32 0.0, %v591
        %v593 = vpop.f32.mrf.mxu0
        %v594 = vadd.f32 0.0, %v593
        %595 = vmatmul.bf16.gmra.mxu0 %v580
        %v596 = vpop.f32.mrf.mxu0
        %v597 = vadd.f32 0.0, %v596
        %v598 = vpop.f32.mrf.mxu0
        %v599 = vadd.f32 0.0, %v598
        %600 = vdwg.mxu0
        %601 = vst.msk [vmem:[#allocation6] sm:$0xff] %vm358, %v592
        %602 = vst.msk [vmem:[#allocation6 + $0x8] sm:$0xff] %vm358, %v594
        %603 = vst.msk [vmem:[#allocation6 + $0x10] sm:$0xff] %vm358, %v597
        %604 = vst.msk [vmem:[#allocation6 + $0x18] sm:$0xff] %vm358, %v599
        %v605 = vld [vmem:[%s4] sm:$0xff]
        %v606 = vld [vmem:[%s4 + $0x8] sm:$0xff]
        %v607 = vld [vmem:[%s4 + $0x10] sm:$0xff]
        %v608 = vld [vmem:[%s4 + $0x18] sm:$0xff]
        %v609 = vlaneseq
        %v610 = vshrl.u32 %v609, 7
        %v611 = vadd.s32 %v610, 8
        %v612 = vlaneseq
        %v613 = vand.u32 %v612, 127
        %v614 = vmul.u32 %v613, 2
        %vm615 = vcmp.eq.s32.totalorder %v610, %v614
        %vm616 = vcmp.eq.s32.totalorder %v611, %v614
        %v617 = vsel %vm615, 1.0, 0.0
        %v618 = vsel %vm616, 1.0, 0.0
        %v619 = vld [vmem:[#allocation6] sm:$0xff]
        %v620 = vld [vmem:[#allocation6 + $0x8] sm:$0xff]
        %v621 = vld [vmem:[#allocation6 + $0x10] sm:$0xff]
        %v622 = vld [vmem:[#allocation6 + $0x18] sm:$0xff]
        %624 = vset.pattern.permute.xlu0 0
        %625 = vperm.xlu0 %624, %v605
        %v626 = vpop.permute.xlu0 %625
        %629 = vset.pattern.permute.xlu0 0
        %630 = vperm.xlu0 %629, %v606
        %v631 = vpop.permute.xlu0 %630
        %634 = vset.pattern.permute.xlu0 0
        %635 = vperm.xlu0 %634, %v607
        %v636 = vpop.permute.xlu0 %635
        %639 = vset.pattern.permute.xlu0 0
        %640 = vperm.xlu0 %639, %v608
        %v641 = vpop.permute.xlu0 %640
        %vm643 = vcmask 121856
        %v645 = vsel %vm643, %v619, 0
        %v648 = vsel %vm643, %v620, 0
        %v651 = vsel %vm643, %v621, 0
        %v654 = vsel %vm643, %v622, 0
        %vm656 = vcmask 1046528
        %v658 = vsel %vm656, %v618, 0
        %660 = vmatpush.msra.mxu0 0.0
        %661 = vmatpush.msra.mxu0 0.0
        %662 = vmatpush.msra.mxu0 0.0
        %663 = vmatpush.msra.mxu0 0.0
        %664 = vmatpush.msra.mxu0 0.0
        %665 = vmatpush.msra.mxu0 0.0
        %666 = vmatpush.msra.mxu0 0.0
        %667 = vmatpush.msra.mxu0 0.0
        %668 = vmatpush.msra.mxu0 0.0
        %669 = vmatpush.msra.mxu0 0.0
        %670 = vmatpush.msra.mxu0 0.0
        %671 = vmatpush.msra.mxu0 0.0
        %672 = vmatpush.msra.mxu0 0.0
        %673 = vmatpush.msra.mxu0 0.0
        %674 = vmatpush.msra.mxu0 %v658
        %675 = vmatpush.msra.mxu0 %v617
        %676 = vmatmul.f32.gmra.mxu0 %v645
        %v677 = vpop.f32.mrf.mxu0
        %v678 = vadd.f32 %v626, %v677
        %679 = vmatmul.f32.gmra.mxu0 %v648
        %v680 = vpop.f32.mrf.mxu0
        %v681 = vadd.f32 %v631, %v680
        %682 = vmatmul.f32.gmra.mxu0 %v651
        %v683 = vpop.f32.mrf.mxu0
        %v684 = vadd.f32 %v636, %v683
        %685 = vmatmul.f32.gmra.mxu0 %v654
        %v686 = vpop.f32.mrf.mxu0
        %v687 = vadd.f32 %v641, %v686
        %688 = vdwg.mxu0
        %vm689 = vcmask 64512
        %v690 = vsel %vm689, %v678, 0.0
        %v691 = vsel %vm689, %v681, 0.0
        %v692 = vadd.f32 %v690, %v691
        %v693 = vsel %vm689, %v684, 0.0
        %v694 = vadd.f32 %v692, %v693
        %v695 = vsel %vm689, %v687, 0.0
        %v696 = vadd.f32 %v694, %v695
        %697 = vadd.xlane.f32.xlu0 %v696
        %v698 = vpop.xlane.xlu0 %697
        %v699 = vrot.slane %v698, 4
        %v700 = vadd.f32 %v698, %v699
        %v701 = vrot.slane %v700, 2
        %v702 = vadd.f32 %v700, %v701
        %v703 = vrot.slane %v702, 1
        %v704 = vadd.f32 %v702, %v703
        %s705 = vtos %v704
        %v706 = vstv %s705
        %v707 = vmul.f32 %v706, 0.00390625
        %v708 = vsub.f32 %v678, %v707
        %v709 = vsub.f32 %v681, %v707
        %v710 = vsub.f32 %v684, %v707
        %v711 = vsub.f32 %v687, %v707
        %v712 = vmul.f32 %v708, %v708
        %v713 = vmul.f32 %v709, %v709
        %v714 = vmul.f32 %v710, %v710
        %v715 = vmul.f32 %v711, %v711
        %v716 = vsel %vm689, %v712, 0.0
        %v717 = vsel %vm689, %v713, 0.0
        %v718 = vadd.f32 %v716, %v717
        %v719 = vsel %vm689, %v714, 0.0
        %v720 = vadd.f32 %v718, %v719
        %v721 = vsel %vm689, %v715, 0.0
        %v722 = vadd.f32 %v720, %v721
        %723 = vadd.xlane.f32.xlu0 %v722
        %v724 = vpop.xlane.xlu0 %723
        %v725 = vrot.slane %v724, 4
        %v726 = vadd.f32 %v724, %v725
        %v727 = vrot.slane %v726, 2
        %v728 = vadd.f32 %v726, %v727
        %v729 = vrot.slane %v728, 1
        %v730 = vadd.f32 %v728, %v729
        %s731 = vtos %v730
        %v732 = vstv %s731
        %v733 = vmul.f32 %v732, 0.00390625
        %v734 = vadd.f32 %v733, 1e-05
        %v735 = vrsqrt.pop %v734
        %v736 = vmul.f32 %v735, %v734
        %v737 = vmul.f32 %v736, %v735
        %v738 = vmul.f32 0.5, %v737
        %v739 = vsub.f32 1.5, %v738
        %v740 = vmul.f32 %v735, %v739
        %vm741 = vweird.f32 %v734
        %vm742 = vweird.f32 %v735
        %vm743 = vmor %vm741, %vm742
        %v744 = vsel %vm743, %v735, %v740
        %v745 = vmul.f32 %v708, %v744
        %v746 = vmul.f32 %v709, %v744
        %v747 = vmul.f32 %v710, %v744
        %v748 = vmul.f32 %v711, %v744
        %749 = vset.pattern.permute.xlu0 1
        %750 = vperm.xlu0 %749, %v605
        %v751 = vpop.permute.xlu0 %750
        %753 = vset.pattern.permute.xlu0 1
        %754 = vperm.xlu0 %753, %v606
        %v755 = vpop.permute.xlu0 %754
        %757 = vset.pattern.permute.xlu0 1
        %758 = vperm.xlu0 %757, %v607
        %v759 = vpop.permute.xlu0 %758
        %761 = vset.pattern.permute.xlu0 1
        %762 = vperm.xlu0 %761, %v608
        %v763 = vpop.permute.xlu0 %762
        %v765 = vmul.f32 %v745, %v751
        %v766 = vmul.f32 %v746, %v755
        %v767 = vmul.f32 %v747, %v759
        %v768 = vmul.f32 %v748, %v763
        %769 = vset.pattern.permute.xlu0 2
        %770 = vperm.xlu0 %769, %v605
        %v771 = vpop.permute.xlu0 %770
        %773 = vset.pattern.permute.xlu0 2
        %774 = vperm.xlu0 %773, %v606
        %v775 = vpop.permute.xlu0 %774
        %777 = vset.pattern.permute.xlu0 2
        %778 = vperm.xlu0 %777, %v607
        %v779 = vpop.permute.xlu0 %778
        %781 = vset.pattern.permute.xlu0 2
        %782 = vperm.xlu0 %781, %v608
        %v783 = vpop.permute.xlu0 %782
        %v785 = vadd.f32 %v765, %v771
        %v786 = vadd.f32 %v766, %v775
        %v787 = vadd.f32 %v767, %v779
        %v788 = vadd.f32 %v768, %v783
        %vm789 = vcmp.gt.f32.partialorder %v785, 0.0
        %vm790 = vcmp.gt.f32.partialorder %v786, 0.0
        %vm791 = vcmp.gt.f32.partialorder %v787, 0.0
        %vm792 = vcmp.gt.f32.partialorder %v788, 0.0
        %v793 = vmul.f32 %v785, 0.01
        %v794 = vmul.f32 %v786, 0.01
        %v795 = vmul.f32 %v787, 0.01
        %v796 = vmul.f32 %v788, 0.01
        %v797 = vsel %vm789, %v785, %v793
        %v798 = vsel %vm790, %v786, %v794
        %v799 = vsel %vm791, %v787, %v795
        %v800 = vsel %vm792, %v788, %v796
        %v801 = vpack.c.bf16 %v797, %v797
        %v802 = vpack.c.bf16 %v798, %v798
        %v803 = vpack.c.bf16 %v799, %v799
        %v804 = vpack.c.bf16 %v800, %v800
        %vm805 = vcmask 1043520
        %806 = vst.msk [vmem:[#allocation7] sm:$0xf] %vm805, 0
        %807 = vst.msk [vmem:[#allocation7 + $0x4] sm:$0xf] %vm805, 0
        %808 = vst.msk [vmem:[#allocation7 + $0x8] sm:$0xf] %vm805, 0
        %809 = vst.msk [vmem:[#allocation7 + $0xc] sm:$0xf] %vm805, 0
        %vm810 = vcmask 60416
        %811 = vst.msk [vmem:[#allocation7] sm:$0xf] %vm810, %v801
        %812 = vst.msk [vmem:[#allocation7 + $0x4] sm:$0xf] %vm810, %v802
        %813 = vst.msk [vmem:[#allocation7 + $0x8] sm:$0xf] %vm810, %v803
        %814 = vst.msk [vmem:[#allocation7 + $0xc] sm:$0xf] %vm810, %v804
        %v815 = vld [vmem:[%s5] sm:$0xf]
        %v816 = vld [vmem:[#allocation7] sm:$0xf]
        %v817 = vld [vmem:[#allocation7 + $0x4] sm:$0xf]
        %v818 = vld [vmem:[#allocation7 + $0x8] sm:$0xf]
        %v819 = vld [vmem:[#allocation7 + $0xc] sm:$0xf]
        %v820 = vld [vmem:[%s6] sm:$0xff]
        %822 = vset.pattern.permute.xlu0 0
        %823 = vperm.xlu0 %822, %v820
        %v824 = vpop.permute.xlu0 %823
        %v830 = vunpack.c.l.b16 %v816
        %v831 = vunpack.c.l.b16 %v817
        %v832 = vunpack.c.l.b16 %v818
        %v833 = vunpack.c.l.b16 %v819
        %v834 = vpack.c.b16 %v831, %v830
        %v835 = vpack.c.b16 %v833, %v832
        %vm838 = vcmask 261120
        %v840 = vsel %vm838, %v815, 0
        %842 = vmatpush.bf16.msra.mxu0 0
        %843 = vmatpush.bf16.msra.mxu0 0
        %844 = vmatpush.bf16.msra.mxu0 0
        %845 = vmatpush.bf16.msra.mxu0 0
        %846 = vmatpush.bf16.msra.mxu0 0
        %847 = vmatpush.bf16.msra.mxu0 0
        %848 = vmatpush.bf16.msra.mxu0 %v835
        %849 = vmatpush.bf16.msra.mxu0 %v834
        %850 = vmatmul.bf16.gmra.mxu0 %v840
        %v851 = vpop.f32.mrf.mxu0
        %v852 = vadd.f32 %v824, %v851
        %v853 = vpop.f32.mrf.mxu0
        %854 = vdwg.mxu0
        %855 = vst [vmem:[%s269] sm:$0xff] %v852
        %s856 = sand.u32 %s181, 1
        %s857 = scalar_lea.sflag [#allocation9], %s856
        %s858 = sand.u32 %s181, 1
        %s859 = smul.addr %s858, 8
        %s860 = scalar_lea.vmem [#allocation8], %s859
        // Predicated region
        $region49: #{tpu_custom_call.1} parent=47 // pred_check
          %p861 = pneg %p191
        $region50: #{tpu_custom_call.1} parent=47 // pred_check_branch
          %863 = sbr.rel (%p861) target = $region52
        $region51: #{tpu_custom_call.1} parent=47 // pred_region
          %865 = vsyncadd %s857, 0
          %s866 = smul.addr %s21, 8
          %s867 = scalar_lea.hbm %s7, %s866
          %s869 = sshll.u32 %s860, 4
          %s870 = int_to_ptr.vmem [resolvable:$true] %s869
          %s871 = sshll.u32 %s867, 4
          %s872 = int_to_ptr.hbm [resolvable:$true] %s871
          %874 = dma.vmem_to_hbm [thread:$0]  %s870, 128, %s872, %s857
        $region52: #{tpu_custom_call.1} parent=47 // pred_fallthru
          _
      $region48: #{tpu_custom_call.1} parent=5 // pred_fallthru
        _
      %p875 = scmp.le.s32.totalorder 2, %s16
      // Predicated region
      $region53: #{tpu_custom_call.1} parent=5 // pred_check
        %p876 = pneg %p875
      $region54: #{tpu_custom_call.1} parent=5 // pred_check_branch
        %878 = sbr.rel (%p876) target = $region56
      $region55: #{tpu_custom_call.1} parent=5 // pred_region
        %s879 = ssub.s32 %s16, 2
        // Predicated region
        $region57: #{tpu_custom_call.1} parent=55 // pred_check
          %p880 = pneg %p197
        $region58: #{tpu_custom_call.1} parent=55 // pred_check_branch
          %882 = sbr.rel (%p880) target = $region60
        $region59: #{tpu_custom_call.1} parent=55 // pred_region
          %s883 = sand.u32 %s182, 1
          %s884 = scalar_lea.sflag [#allocation9], %s883
          %s885 = sand.u32 %s182, 1
          %s886 = smul.addr %s885, 8
          %s887 = scalar_lea.vmem [#allocation8], %s886
          %889 = dma.done %s884, 128
        $region60: #{tpu_custom_call.1} parent=55 // pred_fallthru
          _
      $region56: #{tpu_custom_call.1} parent=5 // pred_fallthru
        _
    $region6: #{tpu_custom_call.1} parent=1 // loop_footer
      %s20 = sadd.s32 1, %s16
    $region7: #{tpu_custom_call.1} parent=1 // loop_footer_branch
      %15 = sbr.rel target = $region3
    $region8: #{tpu_custom_call.1} parent=1 // loop_exit
      _
    %890 = vsyncpa [#allocation9], 1
    %s891 = scalar_lea.sflag [#allocation9], 1
    %892 = vsyncpa %s891, 1

</llo_original>
